<compile_context>
chip_gen: v7x
topology: tpu7x:2x2x1
jax: 0.10.0
libtpu: 0.0.40
codegen_flags: <defaults>
</compile_context>

<pallas_src>
import math
import functools

import jax
import jax.numpy as jnp
from jax.experimental import pallas as pl
from jax.experimental.pallas import tpu as pltpu


_VMEM_LIMIT_BYTES = 48 * 1024 * 1024      # fits v7x's 64 MiB/TC with headroom
_VMEM_BUDGET_BYTES = 40 * 1024 * 1024     # target working set when sizing tiles
_SMALL_PATH_MAX_BYTES = 20 * 1024 * 1024  # below this, skip tiling entirely


def _round_up(v, m):
    return (v + m - 1) // m * m


# ---------------------------------------------------------------------------
# Kernels
# ---------------------------------------------------------------------------

def _fused_small_kernel(x_ref, w_ref, adj_ref, b_ref, out_ref, *, ax_first):
    """Whole problem in VMEM, one grid step."""
    if ax_first:   # F < O: contract the N^2 term over F (cheaper), then apply w.
        h = jnp.dot(adj_ref[...], x_ref[...], preferred_element_type=jnp.float32)
        out = jnp.dot(h.astype(w_ref.dtype), w_ref[...],
                      preferred_element_type=jnp.float32)
    else:          # O <= F: classic support = x @ w, then adj @ support.
        s = jnp.dot(x_ref[...], w_ref[...], preferred_element_type=jnp.float32)
        out = jnp.dot(adj_ref[...], s.astype(adj_ref.dtype),
                      preferred_element_type=jnp.float32)
    out_ref[...] = (out + b_ref[...]).astype(out_ref.dtype)


def _tiled_ax_kernel(adj_ref, x_ref, w_ref, b_ref, out_ref):
    """Row-tiled, F < O:  out_tile = (adj_tile @ x) @ w + b."""
    h = jnp.dot(adj_ref[...], x_ref[...], preferred_element_type=jnp.float32)
    out = jnp.dot(h.astype(w_ref.dtype), w_ref[...],
                  preferred_element_type=jnp.float32)
    out_ref[...] = (out + b_ref[...]).astype(out_ref.dtype)


def _tiled_support_kernel(x_ref, w_ref, s_ref):
    """Row-tiled: support_tile = x_tile @ w (computed once, fed to the agg kernel)."""
    s_ref[...] = jnp.dot(x_ref[...], w_ref[...],
                         preferred_element_type=jnp.float32).astype(s_ref.dtype)


def _tiled_agg_kernel(adj_ref, s_ref, b_ref, out_ref):
    """Row-tiled, O <= F:  out_tile = adj_tile @ support + b."""
    out = jnp.dot(adj_ref[...], s_ref[...], preferred_element_type=jnp.float32)
    out_ref[...] = (out + b_ref[...]).astype(out_ref.dtype)


# ---------------------------------------------------------------------------
# Wrapper
# ---------------------------------------------------------------------------

def _choose_tile_rows(n_rows, resident_bytes, bytes_per_row, itemsize, requested):
    cap = _round_up(n_rows, 16)
    tm = requested if requested is not None else (512 if itemsize <= 2 else 256)
    tm = min(_round_up(tm, 16), cap)
    # Shrink until resident arrays + double-buffered row strips fit the budget.
    while tm > 16 and resident_bytes + 2 * tm * bytes_per_row > _VMEM_BUDGET_BYTES:
        tm = _round_up(tm // 2, 16)
    return max(tm, 16)


@functools.partial(
    jax.jit,
    static_argnames=("has_bias", "compute_dtype", "force_tiled", "tile_rows"),
)
def graph_convolution(x, adj, w, b=None, *, has_bias=False, compute_dtype=None,
                      force_tiled=False, tile_rows=None):
    """GCN layer forward: out = adj @ (x @ w) [+ b]  (adjacency consumed dense)."""
    N, F = x.shape
    F2, O = w.shape
    assert F == F2 and adj.shape == (N, N)
    if has_bias:
        assert b is not None and b.shape == (O,)

    out_dtype = x.dtype
    cdt = jnp.dtype(compute_dtype) if compute_dtype is not None else jnp.dtype(x.dtype)
    isz = cdt.itemsize
    out_isz = jnp.dtype(out_dtype).itemsize

    # Lane-dense output: pad O to a multiple of 128 (unmasked stores), slice after.
    Opad = _round_up(O, 128)

    xc = x.astype(cdt)
    adjc = adj.astype(cdt)
    wc = jnp.pad(w.astype(cdt), ((0, 0), (0, Opad - O)))
    if has_bias:
        b2 = jnp.pad(b.astype(jnp.float32).reshape(1, O), ((0, 0), (0, Opad - O)))
    else:
        b2 = jnp.zeros((1, Opad), jnp.float32)   # f32 bias add is negligible

    # Reassociation: the dominant N^2 contraction runs over min(F, O).
    ax_first = F < O

    cp_single = pltpu.CompilerParams(vmem_limit_bytes=_VMEM_LIMIT_BYTES)
    cp_tiled = pltpu.CompilerParams(
        dimension_semantics=("parallel",),        # shard row tiles over v7x's 2 TCs
        vmem_limit_bytes=_VMEM_LIMIT_BYTES,
    )

    # ---------------- small path: single grid step, everything resident ---------
    small_bytes = 2 * ((N * F + N * N + F * Opad) * isz + N * Opad * out_isz)
    if not force_tiled and small_bytes <= _SMALL_PATH_MAX_BYTES:
        full = lambda shape: pl.BlockSpec(shape, lambda: (0,) * len(shape))
        out_p = pl.pallas_call(
            functools.partial(_fused_small_kernel, ax_first=ax_first),
            out_shape=jax.ShapeDtypeStruct((N, Opad), out_dtype),
            in_specs=[full((N, F)), full((F, Opad)), full((N, N)), full((1, Opad))],
            out_specs=full((N, Opad)),
            compiler_params=cp_single,
        )(xc, wc, adjc, b2)
        return out_p[:, :O]

    # ---------------- tiled path: row strips of adj/out, resident x/w/support ---
    Npad0 = _round_up(N, 16)
    if ax_first:
        resident = (Npad0 * F + F * Opad) * isz + Opad * 4
    else:
        resident = Npad0 * Opad * isz + Opad * 4
    bytes_per_row = Npad0 * isz + Opad * out_isz
    tm = _choose_tile_rows(N, resident, bytes_per_row, isz, tile_rows)
    Npad = _round_up(N, tm)
    grid = (Npad // tm,)

    adj_p = jnp.pad(adjc, ((0, Npad - N), (0, Npad - N)))
    x_p = jnp.pad(xc, ((0, Npad - N), (0, 0)))

    if ax_first:
        # out_tile = (adj_tile @ x) @ w + b ; x, w, b resident; adj/out streamed.
        out_p = pl.pallas_call(
            _tiled_ax_kernel,
            out_shape=jax.ShapeDtypeStruct((Npad, Opad), out_dtype),
            grid=grid,
            in_specs=[
                pl.BlockSpec((tm, Npad), lambda i: (i, 0)),   # adj row strip
                pl.BlockSpec((Npad, F), lambda i: (0, 0)),    # x (resident)
                pl.BlockSpec((F, Opad), lambda i: (0, 0)),    # w (resident)
                pl.BlockSpec((1, Opad), lambda i: (0, 0)),    # bias
            ],
            out_specs=pl.BlockSpec((tm, Opad), lambda i: (i, 0)),
            compiler_params=cp_tiled,
        )(adj_p, x_p, wc, b2)
    else:
        # support = x @ w computed once (separate call: a step-0 scratch would be
        # wrong once the row axis is sharded across TensorCores), then streamed
        # adjacency row strips against the resident support.
        support = pl.pallas_call(
            _tiled_support_kernel,
            out_shape=jax.ShapeDtypeStruct((Npad, Opad), cdt),
            grid=grid,
            in_specs=[
                pl.BlockSpec((tm, F), lambda i: (i, 0)),      # x row strip
                pl.BlockSpec((F, Opad), lambda i: (0, 0)),    # w (resident)
            ],
            out_specs=pl.BlockSpec((tm, Opad), lambda i: (i, 0)),
            compiler_params=cp_tiled,
        )(x_p, wc)
        out_p = pl.pallas_call(
            _tiled_agg_kernel,
            out_shape=jax.ShapeDtypeStruct((Npad, Opad), out_dtype),
            grid=grid,
            in_specs=[
                pl.BlockSpec((tm, Npad), lambda i: (i, 0)),   # adj row strip
                pl.BlockSpec((Npad, Opad), lambda i: (0, 0)), # support (resident)
                pl.BlockSpec((1, Opad), lambda i: (0, 0)),    # bias
            ],
            out_specs=pl.BlockSpec((tm, Opad), lambda i: (i, 0)),
            compiler_params=cp_tiled,
        )(adj_p, support, b2)

    return out_p[:N, :O]


def init_params(key, feature_numbers, out_numbers, bias=False, dtype=jnp.float32):
    """Deterministic re-implementation of GraphConvolution.reset_parameters()."""
    stdv = 1.0 / math.sqrt(out_numbers)
    kw, kb = jax.random.split(key)
    w = jax.random.uniform(
        kw, (feature_numbers, out_numbers), dtype=dtype, minval=-stdv, maxval=stdv
    )
    b = None
    if bias:
        b = jax.random.uniform(
            kb, (out_numbers,), dtype=dtype, minval=-stdv, maxval=stdv
        )
    return w, b


if __name__ == "__main__":
    key = jax.random.PRNGKey(0)

    # ---- test 1: toy module shapes; small single-step path; F < O reassociation.
    N, F, O = 64, 32, 128
    k1, k2, k3, key = jax.random.split(key, 4)
    x = jax.random.normal(k1, (N, F), dtype=jnp.float32)
    adj = jax.random.uniform(k2, (N, N), dtype=jnp.float32)
    adj = (adj + adj.T) * 0.5
    adj = adj / jnp.sum(adj, axis=1, keepdims=True)
    w, b = init_params(k3, F, O, bias=True)
    out = jax.block_until_ready(graph_convolution(x, adj, w, b, has_bias=True))
    ref = adj @ (x @ w) + b
    assert out.shape == (N, O)
    assert jnp.allclose(out, ref, atol=1e-4, rtol=1e-4)

    # ---- test 2: tiled path, O <= F (support computed once, adj row strips);
    #              O not a multiple of 128 exercises lane padding.
    N, F, O = 384, 256, 96
    k1, k2, k3, key = jax.random.split(key, 4)
    x = jax.random.normal(k1, (N, F), dtype=jnp.float32)
    adj = jax.random.uniform(k2, (N, N), dtype=jnp.float32)
    adj = adj / jnp.sum(adj, axis=1, keepdims=True)
    w, _ = init_params(k3, F, O, bias=False)
    out = jax.block_until_ready(
        graph_convolution(x, adj, w, has_bias=False, force_tiled=True, tile_rows=128)
    )
    ref = adj @ (x @ w)
    assert out.shape == (N, O)
    assert jnp.allclose(out, ref, atol=1e-4, rtol=1e-4)

    # ---- test 3: tiled path, F < O, bf16 compute with f32 accumulation, bias.
    N, F, O = 256, 48, 160
    k1, k2, k3, key = jax.random.split(key, 4)
    x = jax.random.normal(k1, (N, F), dtype=jnp.float32)
    adj = jax.random.uniform(k2, (N, N), dtype=jnp.float32)
    adj = adj / jnp.sum(adj, axis=1, keepdims=True)
    w, b = init_params(k3, F, O, bias=True)
    out = jax.block_until_ready(
        graph_convolution(x, adj, w, b, has_bias=True, force_tiled=True,
                          tile_rows=64, compute_dtype=jnp.bfloat16)
    )
    ref = adj @ (x @ w) + b
    assert out.shape == (N, O)
    assert jnp.allclose(out, ref, atol=2e-2, rtol=5e-2)

    print("KERNEL_OK")
</pallas_src>

<mosaic_0001>
module attributes {stable_mosaic.version = 11 : i64} {
  func.func @_fused_small_kernel(%arg0: memref<64x32xf32, #tpu.memory_space<vmem>>, %arg1: memref<32x128xf32, #tpu.memory_space<vmem>>, %arg2: memref<64x64xf32, #tpu.memory_space<vmem>>, %arg3: memref<1x128xf32, #tpu.memory_space<vmem>>, %arg4: memref<64x128xf32, #tpu.memory_space<vmem>>) attributes {dimension_semantics = [], scalar_prefetch = 0 : i64, scratch_operands = 0 : i64, tpu.core_type = #tpu.core_type<tc>} {
    %c0 = arith.constant 0 : index
    %c0_0 = arith.constant 0 : index
    %0 = vector.load %arg2[%c0, %c0_0] : memref<64x64xf32, #tpu.memory_space<vmem>>, vector<64x64xf32>
    %c0_1 = arith.constant 0 : index
    %c0_2 = arith.constant 0 : index
    %1 = vector.load %arg0[%c0_1, %c0_2] : memref<64x32xf32, #tpu.memory_space<vmem>>, vector<64x32xf32>
    %cst = arith.constant dense<0.000000e+00> : vector<64x32xf32>
    %2 = tpu.matmul %0, %1, %cst {dimension_numbers = #tpu.dot_dimension_numbers<[1], [0], [0], [1], [0, 0, 1, 1], [], []>} : vector<64x64xf32>, vector<64x32xf32>, vector<64x32xf32> -> vector<64x32xf32>
    %c0_3 = arith.constant 0 : index
    %c0_4 = arith.constant 0 : index
    %3 = vector.load %arg1[%c0_3, %c0_4] : memref<32x128xf32, #tpu.memory_space<vmem>>, vector<32x128xf32>
    %cst_5 = arith.constant dense<0.000000e+00> : vector<64x128xf32>
    %4 = tpu.matmul %2, %3, %cst_5 {dimension_numbers = #tpu.dot_dimension_numbers<[1], [0], [0], [1], [0, 0, 1, 1], [], []>} : vector<64x32xf32>, vector<32x128xf32>, vector<64x128xf32> -> vector<64x128xf32>
    %c0_6 = arith.constant 0 : index
    %c0_7 = arith.constant 0 : index
    %5 = vector.load %arg3[%c0_6, %c0_7] : memref<1x128xf32, #tpu.memory_space<vmem>>, vector<1x128xf32>
    %6 = vector.broadcast %5 : vector<1x128xf32> to vector<64x128xf32>
    %7 = arith.addf %4, %6 : vector<64x128xf32>
    %c0_8 = arith.constant 0 : index
    %c0_9 = arith.constant 0 : index
    %8 = vector.load %arg4[%c0_8, %c0_9] : memref<64x128xf32, #tpu.memory_space<vmem>>, vector<64x128xf32>
    tpu.vector_store %arg4[%c0_8, %c0_9], %7 {strides = array<i32>} : memref<64x128xf32, #tpu.memory_space<vmem>>, vector<64x128xf32>,
    return
  }
}

</mosaic_0001>

<llo_original>
// kernel: graph_convolution.1
$region0: #{graph_convolution.1}
  #allocation0 [shape = 'u32[]', space=smem, size = 0x4, offset = 0x4, fixed_abs, tag = 'smem constant byte address 0x4 - core index']
  #allocation1 [shape = 'u32[144,128]{1,0:T(1,128)}', space=vmem, size = 0x12000, scoped, tag = 'internal scratch']
  %s0 = inlined_call_operand.vmem [shape: f32[64,32], index: 0, kind: input, shape index: {}]
  %s1 = inlined_call_operand.vmem [shape: f32[32,128], index: 1, kind: input, shape index: {}]
  %s2 = inlined_call_operand.vmem [shape: f32[64,64], index: 2, kind: input, shape index: {}]
  %s3 = inlined_call_operand.vmem [shape: f32[1,128], index: 3, kind: input, shape index: {}]
  %s4 = inlined_call_operand.hbm [shape: f32[64,128], index: 4, kind: output, shape index: {}]
  %s5 = sld [smem:[#allocation0]]
  $region26: #{graph_convolution.1} parent=0
    _
  %s7 = ssub.s32 1, %s5
  %s8 = scalar_select 0, %s7, %s5
  $region1: #{graph_convolution.1} parent=0
    #allocation2 [shape = 'u8[32768]{0}', space=vmem, size = 0x8000, scoped, tag = 'output window, operand 0, single buffered']
    #allocation3 [shape = 's32[1]{0}', space=sflag, size = 0x4, scoped, tag = 'scoped memory for graph_convolution.1']
    %9 = vsyncpa [#allocation3], 0
    // Predicated region
    $region2: #{graph_convolution.1} parent=1 // pred_check
      _
    $region3: #{graph_convolution.1} parent=1 // pred_check_branch
      %11 = sbr.rel (0) target = $region5
    $region4: #{graph_convolution.1} parent=1 // pred_region
      _
    $region5: #{graph_convolution.1} parent=1 // pred_fallthru
      _
    // Predicated region
    $region6: #{graph_convolution.1} parent=1 // pred_check
      _
    $region7: #{graph_convolution.1} parent=1 // pred_check_branch
      %13 = sbr.rel (0) target = $region9
    $region8: #{graph_convolution.1} parent=1 // pred_region
      _
    $region9: #{graph_convolution.1} parent=1 // pred_fallthru
      _
    // Predicated region
    $region10: #{graph_convolution.1} parent=1 // pred_check
      _
    $region11: #{graph_convolution.1} parent=1 // pred_check_branch
      %15 = sbr.rel (0) target = $region13
    $region12: #{graph_convolution.1} parent=1 // pred_region
      _
    $region13: #{graph_convolution.1} parent=1 // pred_fallthru
      _
    // Predicated region
    $region14: #{graph_convolution.1} parent=1 // pred_check
      _
    $region15: #{graph_convolution.1} parent=1 // pred_check_branch
      %17 = sbr.rel (0) target = $region17
    $region16: #{graph_convolution.1} parent=1 // pred_region
      _
    $region17: #{graph_convolution.1} parent=1 // pred_fallthru
      _
    %v18 = vld [vmem:[%s2] sm:$0xff]
    %v19 = vld [vmem:[%s2 + $0x8] sm:$0xff]
    %v20 = vld [vmem:[%s2 + $0x10] sm:$0xff]
    %v21 = vld [vmem:[%s2 + $0x18] sm:$0xff]
    %v22 = vld [vmem:[%s2 + $0x20] sm:$0xff]
    %v23 = vld [vmem:[%s2 + $0x28] sm:$0xff]
    %v24 = vld [vmem:[%s2 + $0x30] sm:$0xff]
    %v25 = vld [vmem:[%s2 + $0x38] sm:$0xff]
    %v26 = vld [vmem:[%s0] sm:$0xff]
    %v27 = vld [vmem:[%s0 + $0x8] sm:$0xff]
    %v28 = vld [vmem:[%s0 + $0x10] sm:$0xff]
    %v29 = vld [vmem:[%s0 + $0x18] sm:$0xff]
    %v30 = vld [vmem:[%s0 + $0x20] sm:$0xff]
    %v31 = vld [vmem:[%s0 + $0x28] sm:$0xff]
    %v32 = vld [vmem:[%s0 + $0x30] sm:$0xff]
    %v33 = vld [vmem:[%s0 + $0x38] sm:$0xff]
    %vm34 = vcmask 523264
    %v36 = vsel %vm34, %v18, 0
    %v39 = vsel %vm34, %v19, 0
    %v42 = vsel %vm34, %v20, 0
    %v45 = vsel %vm34, %v21, 0
    %v48 = vsel %vm34, %v22, 0
    %v51 = vsel %vm34, %v23, 0
    %v54 = vsel %vm34, %v24, 0
    %v57 = vsel %vm34, %v25, 0
    %59 = vmatprep.subr.mxu0 0.0
    %60 = vmatpush1.msra.mxu0 %v26
    %61 = vmatprep.subr.mxu0 0.0
    %62 = vmatpush1.msra.mxu0 %v27
    %63 = vmatprep.subr.mxu0 0.0
    %64 = vmatpush1.msra.mxu0 %v28
    %65 = vmatprep.subr.mxu0 0.0
    %66 = vmatpush1.msra.mxu0 %v29
    %67 = vmatprep.subr.mxu0 0.0
    %68 = vmatpush1.msra.mxu0 %v30
    %69 = vmatprep.subr.mxu0 0.0
    %70 = vmatpush1.msra.mxu0 %v31
    %71 = vmatprep.subr.mxu0 0.0
    %72 = vmatpush1.msra.mxu0 %v32
    %73 = vmatprep.subr.mxu0 0.0
    %74 = vmatpush1.msra.mxu0 %v33
    %75 = vmatprep.subr.mxu0 0.0
    %76 = vmatpush1.msra.mxu0 0.0
    %77 = vmatprep.subr.mxu0 0.0
    %78 = vmatpush1.msra.mxu0 0.0
    %79 = vmatprep.subr.mxu0 0.0
    %80 = vmatpush1.msra.mxu0 0.0
    %81 = vmatprep.subr.mxu0 0.0
    %82 = vmatpush1.msra.mxu0 0.0
    %83 = vmatprep.subr.mxu0 0.0
    %84 = vmatpush1.msra.mxu0 0.0
    %85 = vmatprep.subr.mxu0 0.0
    %86 = vmatpush1.msra.mxu0 0.0
    %87 = vmatprep.subr.mxu0 0.0
    %88 = vmatpush1.msra.mxu0 0.0
    %89 = vmatprep.subr.mxu0 0.0
    %90 = vmatpush1.msra.mxu0 0.0
    %91 = vmatprep.subr.mxu0 0.0
    %92 = vmatpush1.msra.mxu0 0.0
    %93 = vmatprep.subr.mxu0 0.0
    %94 = vmatpush1.msra.mxu0 0.0
    %95 = vmatprep.subr.mxu0 0.0
    %96 = vmatpush1.msra.mxu0 0.0
    %97 = vmatprep.subr.mxu0 0.0
    %98 = vmatpush1.msra.mxu0 0.0
    %99 = vmatprep.subr.mxu0 0.0
    %100 = vmatpush1.msra.mxu0 0.0
    %101 = vmatprep.subr.mxu0 0.0
    %102 = vmatpush1.msra.mxu0 0.0
    %103 = vmatprep.subr.mxu0 0.0
    %104 = vmatpush1.msra.mxu0 0.0
    %105 = vmatprep.subr.mxu0 0.0
    %106 = vmatpush1.msra.mxu0 0.0
    %107 = vmatprep.subr.mxu0 0.0
    %108 = vmatpush1.msra.mxu0 0.0
    %109 = vmatprep.subr.mxu0 0.0
    %110 = vmatpush1.msra.mxu0 0.0
    %111 = vmatprep.subr.mxu0 0.0
    %112 = vmatpush1.msra.mxu0 0.0
    %113 = vmatprep.subr.mxu0 0.0
    %114 = vmatpush1.msra.mxu0 0.0
    %115 = vmatprep.subr.mxu0 0.0
    %116 = vmatpush1.msra.mxu0 0.0
    %117 = vmatprep.subr.mxu0 0.0
    %118 = vmatpush1.msra.mxu0 0.0
    %119 = vmatprep.subr.mxu0 0.0
    %120 = vmatpush1.msra.mxu0 0.0
    %121 = vmatprep.subr.mxu0 0.0
    %122 = vmatpush1.msra.mxu0 0.0
    %123 = vmatprep.mubr.f32.mxu0 0.0
    %124 = vmatmul.mubr.f32.gmra.mrb[0].mxu0 %v36
    %v125 = vpop.f32.mrb[0].mxu0
    %v126 = vadd.f32 0.0, %v125
    %v127 = vpop.f32.mrb[0].mxu0
    %128 = vmatprep.mubr.f32.mxu0 0.0
    %129 = vmatmul.mubr.f32.gmra.mrb[0].mxu0 %v39
    %v130 = vpop.f32.mrb[0].mxu0
    %v131 = vadd.f32 0.0, %v130
    %v132 = vpop.f32.mrb[0].mxu0
    %133 = vmatprep.mubr.f32.mxu0 0.0
    %134 = vmatmul.mubr.f32.gmra.mrb[0].mxu0 %v42
    %v135 = vpop.f32.mrb[0].mxu0
    %v136 = vadd.f32 0.0, %v135
    %v137 = vpop.f32.mrb[0].mxu0
    %138 = vmatprep.mubr.f32.mxu0 0.0
    %139 = vmatmul.mubr.f32.gmra.mrb[0].mxu0 %v45
    %v140 = vpop.f32.mrb[0].mxu0
    %v141 = vadd.f32 0.0, %v140
    %v142 = vpop.f32.mrb[0].mxu0
    %143 = vmatprep.mubr.f32.mxu0 0.0
    %144 = vmatmul.mubr.f32.gmra.mrb[0].mxu0 %v48
    %v145 = vpop.f32.mrb[0].mxu0
    %v146 = vadd.f32 0.0, %v145
    %v147 = vpop.f32.mrb[0].mxu0
    %148 = vmatprep.mubr.f32.mxu0 0.0
    %149 = vmatmul.mubr.f32.gmra.mrb[0].mxu0 %v51
    %v150 = vpop.f32.mrb[0].mxu0
    %v151 = vadd.f32 0.0, %v150
    %v152 = vpop.f32.mrb[0].mxu0
    %153 = vmatprep.mubr.f32.mxu0 0.0
    %154 = vmatmul.mubr.f32.gmra.mrb[0].mxu0 %v54
    %v155 = vpop.f32.mrb[0].mxu0
    %v156 = vadd.f32 0.0, %v155
    %v157 = vpop.f32.mrb[0].mxu0
    %158 = vmatprep.mubr.f32.mxu0 0.0
    %159 = vmatmul.mubr.f32.gmra.mrb[0].mxu0 %v57
    %v160 = vpop.f32.mrb[0].mxu0
    %v161 = vadd.f32 0.0, %v160
    %v162 = vpop.f32.mrb[0].mxu0
    %163 = vdwg.mxu0
    %v164 = vld [vmem:[%s1] sm:$0xff]
    %v165 = vld [vmem:[%s1 + $0x8] sm:$0xff]
    %v166 = vld [vmem:[%s1 + $0x10] sm:$0xff]
    %v167 = vld [vmem:[%s1 + $0x18] sm:$0xff]
    %v168 = vld [vmem:[%s3] sm:$0x1]
    %v170 = vlaneseq
    %v171 = vshrl.u32 %v170, 7
    %v172 = vsub.s32 0, %v171
    %v173 = vrot.slane %v168, %v172
    %vm175 = vcmask 261120
    %v177 = vsel %vm175, %v126, 0
    %v180 = vsel %vm175, %v131, 0
    %v183 = vsel %vm175, %v136, 0
    %v186 = vsel %vm175, %v141, 0
    %v189 = vsel %vm175, %v146, 0
    %v192 = vsel %vm175, %v151, 0
    %v195 = vsel %vm175, %v156, 0
    %v198 = vsel %vm175, %v161, 0
    %200 = vmatprep.subr.mxu0 0.0
    %201 = vmatpush1.msra.mxu0 %v164
    %202 = vmatprep.subr.mxu0 0.0
    %203 = vmatpush1.msra.mxu0 %v165
    %204 = vmatprep.subr.mxu0 0.0
    %205 = vmatpush1.msra.mxu0 %v166
    %206 = vmatprep.subr.mxu0 0.0
    %207 = vmatpush1.msra.mxu0 %v167
    %208 = vmatprep.subr.mxu0 0.0
    %209 = vmatpush1.msra.mxu0 0.0
    %210 = vmatprep.subr.mxu0 0.0
    %211 = vmatpush1.msra.mxu0 0.0
    %212 = vmatprep.subr.mxu0 0.0
    %213 = vmatpush1.msra.mxu0 0.0
    %214 = vmatprep.subr.mxu0 0.0
    %215 = vmatpush1.msra.mxu0 0.0
    %216 = vmatprep.subr.mxu0 0.0
    %217 = vmatpush1.msra.mxu0 0.0
    %218 = vmatprep.subr.mxu0 0.0
    %219 = vmatpush1.msra.mxu0 0.0
    %220 = vmatprep.subr.mxu0 0.0
    %221 = vmatpush1.msra.mxu0 0.0
    %222 = vmatprep.subr.mxu0 0.0
    %223 = vmatpush1.msra.mxu0 0.0
    %224 = vmatprep.subr.mxu0 0.0
    %225 = vmatpush1.msra.mxu0 0.0
    %226 = vmatprep.subr.mxu0 0.0
    %227 = vmatpush1.msra.mxu0 0.0
    %228 = vmatprep.subr.mxu0 0.0
    %229 = vmatpush1.msra.mxu0 0.0
    %230 = vmatprep.subr.mxu0 0.0
    %231 = vmatpush1.msra.mxu0 0.0
    %232 = vmatprep.subr.mxu0 0.0
    %233 = vmatpush1.msra.mxu0 0.0
    %234 = vmatprep.subr.mxu0 0.0
    %235 = vmatpush1.msra.mxu0 0.0
    %236 = vmatprep.subr.mxu0 0.0
    %237 = vmatpush1.msra.mxu0 0.0
    %238 = vmatprep.subr.mxu0 0.0
    %239 = vmatpush1.msra.mxu0 0.0
    %240 = vmatprep.subr.mxu0 0.0
    %241 = vmatpush1.msra.mxu0 0.0
    %242 = vmatprep.subr.mxu0 0.0
    %243 = vmatpush1.msra.mxu0 0.0
    %244 = vmatprep.subr.mxu0 0.0
    %245 = vmatpush1.msra.mxu0 0.0
    %246 = vmatprep.subr.mxu0 0.0
    %247 = vmatpush1.msra.mxu0 0.0
    %248 = vmatprep.subr.mxu0 0.0
    %249 = vmatpush1.msra.mxu0 0.0
    %250 = vmatprep.subr.mxu0 0.0
    %251 = vmatpush1.msra.mxu0 0.0
    %252 = vmatprep.subr.mxu0 0.0
    %253 = vmatpush1.msra.mxu0 0.0
    %254 = vmatprep.subr.mxu0 0.0
    %255 = vmatpush1.msra.mxu0 0.0
    %256 = vmatprep.subr.mxu0 0.0
    %257 = vmatpush1.msra.mxu0 0.0
    %258 = vmatprep.subr.mxu0 0.0
    %259 = vmatpush1.msra.mxu0 0.0
    %260 = vmatprep.subr.mxu0 0.0
    %261 = vmatpush1.msra.mxu0 0.0
    %262 = vmatprep.subr.mxu0 0.0
    %263 = vmatpush1.msra.mxu0 0.0
    %264 = vmatprep.mubr.f32.mxu0 0.0
    %265 = vmatmul.mubr.f32.gmra.mrb[0].mxu0 %v177
    %v266 = vpop.f32.mrb[0].mxu0
    %v267 = vadd.f32 %v173, %v266
    %v268 = vpop.f32.mrb[0].mxu0
    %269 = vmatprep.mubr.f32.mxu0 0.0
    %270 = vmatmul.mubr.f32.gmra.mrb[0].mxu0 %v180
    %v271 = vpop.f32.mrb[0].mxu0
    %v272 = vadd.f32 %v173, %v271
    %v273 = vpop.f32.mrb[0].mxu0
    %274 = vmatprep.mubr.f32.mxu0 0.0
    %275 = vmatmul.mubr.f32.gmra.mrb[0].mxu0 %v183
    %v276 = vpop.f32.mrb[0].mxu0
    %v277 = vadd.f32 %v173, %v276
    %v278 = vpop.f32.mrb[0].mxu0
    %279 = vmatprep.mubr.f32.mxu0 0.0
    %280 = vmatmul.mubr.f32.gmra.mrb[0].mxu0 %v186
    %v281 = vpop.f32.mrb[0].mxu0
    %v282 = vadd.f32 %v173, %v281
    %v283 = vpop.f32.mrb[0].mxu0
    %284 = vmatprep.mubr.f32.mxu0 0.0
    %285 = vmatmul.mubr.f32.gmra.mrb[0].mxu0 %v189
    %v286 = vpop.f32.mrb[0].mxu0
    %v287 = vadd.f32 %v173, %v286
    %v288 = vpop.f32.mrb[0].mxu0
    %289 = vmatprep.mubr.f32.mxu0 0.0
    %290 = vmatmul.mubr.f32.gmra.mrb[0].mxu0 %v192
    %v291 = vpop.f32.mrb[0].mxu0
    %v292 = vadd.f32 %v173, %v291
    %v293 = vpop.f32.mrb[0].mxu0
    %294 = vmatprep.mubr.f32.mxu0 0.0
    %295 = vmatmul.mubr.f32.gmra.mrb[0].mxu0 %v195
    %v296 = vpop.f32.mrb[0].mxu0
    %v297 = vadd.f32 %v173, %v296
    %v298 = vpop.f32.mrb[0].mxu0
    %299 = vmatprep.mubr.f32.mxu0 0.0
    %300 = vmatmul.mubr.f32.gmra.mrb[0].mxu0 %v198
    %v301 = vpop.f32.mrb[0].mxu0
    %v302 = vadd.f32 %v173, %v301
    %v303 = vpop.f32.mrb[0].mxu0
    %304 = vdwg.mxu0
    %305 = vst [vmem:[#allocation2] sm:$0xff] %v267
    %306 = vst [vmem:[#allocation2 + $0x8] sm:$0xff] %v272
    %307 = vst [vmem:[#allocation2 + $0x10] sm:$0xff] %v277
    %308 = vst [vmem:[#allocation2 + $0x18] sm:$0xff] %v282
    %309 = vst [vmem:[#allocation2 + $0x20] sm:$0xff] %v287
    %310 = vst [vmem:[#allocation2 + $0x28] sm:$0xff] %v292
    %311 = vst [vmem:[#allocation2 + $0x30] sm:$0xff] %v297
    %312 = vst [vmem:[#allocation2 + $0x38] sm:$0xff] %v302
    // Predicated region
    $region18: #{graph_convolution.1} parent=1 // pred_check
      _
    $region19: #{graph_convolution.1} parent=1 // pred_check_branch
      %314 = sbr.rel (0) target = $region21
    $region20: #{graph_convolution.1} parent=1 // pred_region
      %s316 = ssub.s32 1024, 1024
      %317 = vsyncadd [#allocation3], %s316
      %s318 = sshll.u32 [#allocation2], 4
      %s319 = int_to_ptr.vmem [resolvable:$true] %s318
      %324 = dma.vmem_to_hbm [thread:$0]  %s319, 1024, %s4, [#allocation3], 128, 128, 8
    $region21: #{graph_convolution.1} parent=1 // pred_fallthru
      _
    // Predicated region
    $region22: #{graph_convolution.1} parent=1 // pred_check
      _
    $region23: #{graph_convolution.1} parent=1 // pred_check_branch
      %326 = sbr.rel (0) target = $region25
    $region24: #{graph_convolution.1} parent=1 // pred_region
      %327 = dma.done [#allocation3], 1024
    $region25: #{graph_convolution.1} parent=1 // pred_fallthru
      _
    %328 = vsyncpa [#allocation3], 1

</llo_original>
